<compile_context>
chip_gen: v7x
topology: tpu7x:2x2x1
jax: 0.10.0
libtpu: 0.0.40
codegen_flags: <defaults>
</compile_context>

<pallas_src>
import functools
import math

import jax
import jax.numpy as jnp
from jax.experimental import pallas as pl
from jax.experimental.pallas import tpu as pltpu


_TR_MAX = 2048                            # max row tile (multiple of 32)
_BLOCK_VMEM_BUDGET = 24 * 1024 * 1024     # bytes for the 4 double-buffered in/out blocks
_VMEM_LIMIT_BYTES = 48 * 1024 * 1024      # explicit scoped-VMEM ceiling (safe on v5e/v6e/v7x)


def _affine_kernel(x_ref, m_ref, s_ref, o_ref, *, invert):
    """One lane-dense (TR, C) block: o = (x - m) / s   (or  x * s + m  if invert)."""
    x = x_ref[...].astype(jnp.float32)
    m = m_ref[...]            # (1, C) f32, VMEM-resident across the whole grid
    s = s_ref[...]            # (1, C) f32
    if invert:
        y = x * s + m
    else:
        y = (x - m) / s       # true divide: HBM-bound kernel, costs nothing, torch parity
    o_ref[...] = y.astype(o_ref.dtype)


def _affine_slab(slab, m_row, s_row, *, invert, tr_max):
    """Run the affine kernel over a lane-dense (rows, C) slab (native dtype in/out)."""
    rows, C = int(slab.shape[0]), int(slab.shape[1])
    itemsize = slab.dtype.itemsize
    # Sublane packing multiple for this dtype (8 f32, 16 bf16, 32 int8/fp8).
    sub = 8 * max(1, 4 // itemsize)
    # Pick TR so the 4 double-buffered (TR, C) in/out blocks fit the VMEM budget.
    fit = max(sub, (_BLOCK_VMEM_BUDGET // (4 * C * itemsize)) // sub * sub)
    tr = min(tr_max, fit)
    if rows <= tr:
        tr = rows             # single block spanning the full row extent (always legal)
    grid = (pl.cdiv(rows, tr),)

    return pl.pallas_call(
        functools.partial(_affine_kernel, invert=invert),
        out_shape=jax.ShapeDtypeStruct((rows, C), slab.dtype),
        grid_spec=pltpu.PrefetchScalarGridSpec(
            num_scalar_prefetch=0,
            grid=grid,
            in_specs=[
                pl.BlockSpec((tr, C), lambda i: (i, 0)),
                pl.BlockSpec((1, C), lambda i: (0, 0)),   # stays VMEM-resident
                pl.BlockSpec((1, C), lambda i: (0, 0)),
            ],
            out_specs=pl.BlockSpec((tr, C), lambda i: (i, 0)),
        ),
        compiler_params=pltpu.CompilerParams(
            dimension_semantics=("parallel",),
            allow_input_fusion=[True, False, False],
            vmem_limit_bytes=_VMEM_LIMIT_BYTES,
        ),
    )(slab, m_row, s_row)


def _feature_affine(x, mean, std, *, invert=False, tr_max=_TR_MAX):
    """Per-feature affine transform of a feature-last tensor via the lane-dense kernel."""
    F = int(x.shape[-1])
    assert int(mean.shape[-1]) == F and int(std.shape[-1]) == F, "stats must match features"
    C = math.lcm(F, 128)                  # per-tensor lane-dense width (multiple of 128 & F)
    n = int(x.size)
    if n == 0:
        return x

    flat = x.reshape(-1)                  # native dtype; no value copy, no full-array pad
    rows_full = n // C
    rem = n - rows_full * C               # always a multiple of F

    rep = C // F
    m_row = jnp.tile(jnp.asarray(mean, jnp.float32).reshape(-1), rep).reshape(1, C)
    s_row = jnp.tile(jnp.asarray(std, jnp.float32).reshape(-1), rep).reshape(1, C)

    pieces = []
    if rows_full > 0:
        main = _affine_slab(flat[: rows_full * C].reshape(rows_full, C),
                            m_row, s_row, invert=invert, tr_max=tr_max)
        pieces.append(main.reshape(-1))
    if rem > 0:
        # Pad ONLY the final partial row-group (< C elements) and run it as a tiny call.
        tail_in = jnp.pad(flat[rows_full * C:], (0, C - rem)).reshape(1, C)
        tail = _affine_slab(tail_in, m_row, s_row, invert=invert, tr_max=tr_max)
        pieces.append(tail.reshape(-1)[:rem])

    out_flat = pieces[0] if len(pieces) == 1 else jnp.concatenate(pieces)
    return out_flat.reshape(x.shape)


class FeatureNormalizer:
    """JAX/Pallas port of BeamNGRL FeatureNormalizer (forward pass)."""

    def __init__(self, state_input_feat, state_output_feat, ctrl_feat, input_stats=None):
        n_si, n_so, n_c = len(state_input_feat), len(state_output_feat), len(ctrl_feat)
        self.state_input_mean = jnp.zeros((n_si,), jnp.float32)
        self.state_input_std = jnp.ones((n_si,), jnp.float32)
        self.state_output_mean = jnp.zeros((n_so,), jnp.float32)
        self.state_output_std = jnp.ones((n_so,), jnp.float32)
        self.ctrl_mean = jnp.zeros((n_c,), jnp.float32)
        self.ctrl_std = jnp.ones((n_c,), jnp.float32)
        if input_stats is not None:
            # TODO(synk): original get_stats() parses dataset-stat dicts via
            # get_state_features/get_ctrl_features + dt scaling; here stats are
            # supplied directly as arrays.
            self.state_input_mean = jnp.asarray(input_stats["state_mean"], jnp.float32)
            self.state_input_std = jnp.asarray(input_stats["state_std"], jnp.float32)
            self.ctrl_mean = jnp.asarray(input_stats["ctrl_mean"], jnp.float32)
            self.ctrl_std = jnp.asarray(input_stats["ctrl_std"], jnp.float32)

    # --- normalize / unnormalize helpers (all Pallas-backed) ---
    def normalize_state_input(self, states):
        return _feature_affine(states, self.state_input_mean, self.state_input_std)

    def unnormalize_state_input(self, states):
        return _feature_affine(states, self.state_input_mean, self.state_input_std, invert=True)

    def normalize_state_output(self, states):
        return _feature_affine(states, self.state_output_mean, self.state_output_std)

    def unnormalize_state_output(self, states):
        return _feature_affine(states, self.state_output_mean, self.state_output_std, invert=True)

    def normalize_ctrl(self, ctrls):
        return _feature_affine(ctrls, self.ctrl_mean, self.ctrl_std)

    def unnormalize_ctrl(self, ctrls):
        return _feature_affine(ctrls, self.ctrl_mean, self.ctrl_std, invert=True)

    def __call__(self, states, controls):
        # One pallas_call per tensor (per-tensor C and TR) — see perf notes above.
        return self.normalize_state_input(states), self.normalize_ctrl(controls)


if __name__ == "__main__":
    key = jax.random.PRNGKey(0)
    k_s, k_c, k_m = jax.random.split(key, 3)

    # Small shapes consistent with the module's forward:
    #   states:   [batch, seq, n_state_feat], controls: [batch, seq, n_ctrl_feat]
    batch, seq = 2, 8
    state_input_feat = ["vx", "vy", "wz", "roll", "pitch", "yaw"]   # 6 feats
    state_output_feat = ["dvx_dt", "dvy_dt", "dwz_dt"]              # 3 feats
    ctrl_feat = ["steer", "throttle"]                               # 2 feats
    n_si, n_c = len(state_input_feat), len(ctrl_feat)

    input_stats = {
        "state_mean": jnp.linspace(-1.0, 1.0, n_si, dtype=jnp.float32),
        "state_std": 0.5 + jnp.arange(n_si, dtype=jnp.float32) * 0.25,
        "ctrl_mean": jnp.linspace(0.1, 0.3, n_c, dtype=jnp.float32),
        "ctrl_std": 0.5 + jnp.arange(n_c, dtype=jnp.float32) * 0.5,
    }
    normalizer = FeatureNormalizer(state_input_feat, state_output_feat, ctrl_feat,
                                   input_stats=input_stats)

    states = jax.random.normal(k_s, (batch, seq, n_si), dtype=jnp.float32)
    controls = jax.random.normal(k_c, (batch, seq, n_c), dtype=jnp.float32)

    out_states, out_ctrls = normalizer(states, controls)
    jax.block_until_ready(out_states)
    jax.block_until_ready(out_ctrls)

    ref_states = (states - input_stats["state_mean"]) / input_stats["state_std"]
    ref_ctrls = (controls - input_stats["ctrl_mean"]) / input_stats["ctrl_std"]
    assert jnp.allclose(out_states, ref_states, atol=1e-6, rtol=1e-6)
    assert jnp.allclose(out_ctrls, ref_ctrls, atol=1e-6, rtol=1e-6)
    assert out_states.shape == states.shape and out_states.dtype == states.dtype
    assert out_ctrls.shape == controls.shape and out_ctrls.dtype == controls.dtype

    # Single-tensor paths + round trip (invert kernel).
    s_only = normalizer.normalize_state_input(states)
    back = normalizer.unnormalize_state_input(s_only)
    jax.block_until_ready(back)
    assert jnp.allclose(s_only, ref_states, atol=1e-6, rtol=1e-6)
    assert jnp.allclose(back, states, atol=1e-5, rtol=1e-5)

    # Native-dtype path: bf16 controls stay bf16 in HBM (math in f32 vregs).
    controls_bf16 = controls.astype(jnp.bfloat16)
    out_bf16 = normalizer.normalize_ctrl(controls_bf16)
    jax.block_until_ready(out_bf16)
    ref_bf16 = ((controls_bf16.astype(jnp.float32) - input_stats["ctrl_mean"])
                / input_stats["ctrl_std"]).astype(jnp.bfloat16)
    assert out_bf16.dtype == jnp.bfloat16
    assert jnp.allclose(out_bf16.astype(jnp.float32), ref_bf16.astype(jnp.float32),
                        atol=2e-2, rtol=2e-2)

    # Medium case exercising the multi-block grid (partial/masked last row block)
    # plus the tail-only padded second call (16800 = 43*384 + 288 with C=384).
    medium = jax.random.normal(k_m, (4, 700, n_si), dtype=jnp.float32)
    out_med = _feature_affine(medium, normalizer.state_input_mean,
                              normalizer.state_input_std, tr_max=8)
    jax.block_until_ready(out_med)
    ref_med = (medium - input_stats["state_mean"]) / input_stats["state_std"]
    assert jnp.allclose(out_med, ref_med, atol=1e-6, rtol=1e-6)

    print("KERNEL_OK")
</pallas_src>

<mosaic_0001>
module attributes {stable_mosaic.version = 11 : i64} {
  func.func @_affine_kernel(%arg0: i32, %arg1: memref<1x384xf32, #tpu.memory_space<vmem>>, %arg2: memref<1x384xf32, #tpu.memory_space<vmem>>, %arg3: memref<1x384xf32, #tpu.memory_space<vmem>>, %arg4: memref<1x384xf32, #tpu.memory_space<vmem>>) attributes {dimension_semantics = [#tpu.dimension_semantics<parallel>], iteration_bounds = array<i64: 1>, scalar_prefetch = 0 : i64, scratch_operands = 0 : i64, tpu.core_type = #tpu.core_type<tc>, window_params = [{transform_indices = @transform_0, window_bounds = array<i64: 1, 384>}, {pipeline_mode = #tpu.pipeline_mode<synchronous>, transform_indices = @transform_1, window_bounds = array<i64: 1, 384>}, {pipeline_mode = #tpu.pipeline_mode<synchronous>, transform_indices = @transform_2, window_bounds = array<i64: 1, 384>}, {transform_indices = @transform_3, window_bounds = array<i64: 1, 384>}]} {
    %c0 = arith.constant 0 : index
    %c0_0 = arith.constant 0 : index
    %0 = vector.load %arg1[%c0, %c0_0] : memref<1x384xf32, #tpu.memory_space<vmem>>, vector<1x384xf32>
    %c0_1 = arith.constant 0 : index
    %c0_2 = arith.constant 0 : index
    %1 = vector.load %arg2[%c0_1, %c0_2] : memref<1x384xf32, #tpu.memory_space<vmem>>, vector<1x384xf32>
    %c0_3 = arith.constant 0 : index
    %c0_4 = arith.constant 0 : index
    %2 = vector.load %arg3[%c0_3, %c0_4] : memref<1x384xf32, #tpu.memory_space<vmem>>, vector<1x384xf32>
    %3 = arith.subf %0, %1 : vector<1x384xf32>
    %4 = arith.divf %3, %2 : vector<1x384xf32>
    %c0_5 = arith.constant 0 : index
    %c0_6 = arith.constant 0 : index
    %5 = vector.load %arg4[%c0_5, %c0_6] : memref<1x384xf32, #tpu.memory_space<vmem>>, vector<1x384xf32>
    tpu.vector_store %arg4[%c0_5, %c0_6], %4 {strides = array<i32>} : memref<1x384xf32, #tpu.memory_space<vmem>>, vector<1x384xf32>,
    return
  }
  func.func @transform_0(%arg0: i32) -> (i32, i32) {
    %c0_i32 = arith.constant 0 : i32
    %c0_i32_0 = arith.constant 0 : i32
    return %arg0, %c0_i32 : i32, i32
  }
  func.func @transform_1(%arg0: i32) -> (i32, i32) {
    %c0_i32 = arith.constant 0 : i32
    %c0_i32_0 = arith.constant 0 : i32
    %c0_i32_1 = arith.constant 0 : i32
    return %c0_i32, %c0_i32_0 : i32, i32
  }
  func.func @transform_2(%arg0: i32) -> (i32, i32) {
    %c0_i32 = arith.constant 0 : i32
    %c0_i32_0 = arith.constant 0 : i32
    %c0_i32_1 = arith.constant 0 : i32
    return %c0_i32, %c0_i32_0 : i32, i32
  }
  func.func @transform_3(%arg0: i32) -> (i32, i32) {
    %c0_i32 = arith.constant 0 : i32
    %c0_i32_0 = arith.constant 0 : i32
    return %arg0, %c0_i32 : i32, i32
  }
}

</mosaic_0001>

<llo_original>
// kernel: tpu_custom_call.1
$region0: #{tpu_custom_call.1}
  #allocation0 [shape = 'u32[]', space=smem, size = 0x4, offset = 0x4, fixed_abs, tag = 'smem constant byte address 0x4 - core index']
  #allocation1 [shape = 'u32[144,128]{1,0:T(1,128)}', space=vmem, size = 0x12000, scoped, tag = 'internal scratch']
  %s0 = inlined_call_operand.hbm [shape: f32[1,384], index: 0, kind: input, shape index: {}]
  %s1 = inlined_call_operand.vmem [shape: f32[1,384], index: 1, kind: input, shape index: {}]
  %s2 = inlined_call_operand.vmem [shape: f32[1,384], index: 2, kind: input, shape index: {}]
  %s3 = inlined_call_operand.hbm [shape: f32[1,384], index: 3, kind: output, shape index: {}]
  %s4 = sld [smem:[#allocation0]]
  $region26: #{tpu_custom_call.1} parent=0
    _
  %s6 = ssub.s32 1, %s4
  %s7 = scalar_select 0, %s6, %s4
  $region1: #{tpu_custom_call.1} parent=0
    #allocation2 [shape = 'u8[1536]{0}', space=vmem, size = 0x800, scoped, tag = 'input window, operand 0, single buffered']
    #allocation3 [shape = 's32[1]{0}', space=sflag, size = 0x4, scoped, tag = 'scoped memory for tpu_custom_call.1']
    #allocation4 [shape = 's32[1]{0}', space=sflag, size = 0x4, scoped, tag = 'scoped memory for tpu_custom_call.1']
    #allocation5 [shape = 'u8[1536]{0}', space=vmem, size = 0x800, scoped, tag = 'output window, operand 0, single buffered']
    %8 = vsyncpa [#allocation3], 0
    %9 = vsyncpa [#allocation4], 0
    // Predicated region
    $region2: #{tpu_custom_call.1} parent=1 // pred_check
      _
    $region3: #{tpu_custom_call.1} parent=1 // pred_check_branch
      %11 = sbr.rel (0) target = $region5
    $region4: #{tpu_custom_call.1} parent=1 // pred_region
      %s13 = ssub.s32 48, 48
      %14 = vsyncadd [#allocation3], %s13
      %s16 = sshll.u32 [#allocation2], 4
      %s17 = int_to_ptr.vmem [resolvable:$true] %s16
      %19 = dma.hbm_to_vmem [thread:$0]  %s0, 48, %s17, [#allocation3]
    $region5: #{tpu_custom_call.1} parent=1 // pred_fallthru
      _
    // Predicated region
    $region6: #{tpu_custom_call.1} parent=1 // pred_check
      _
    $region7: #{tpu_custom_call.1} parent=1 // pred_check_branch
      %21 = sbr.rel (0) target = $region9
    $region8: #{tpu_custom_call.1} parent=1 // pred_region
      _
    $region9: #{tpu_custom_call.1} parent=1 // pred_fallthru
      _
    // Predicated region
    $region10: #{tpu_custom_call.1} parent=1 // pred_check
      _
    $region11: #{tpu_custom_call.1} parent=1 // pred_check_branch
      %23 = sbr.rel (0) target = $region13
    $region12: #{tpu_custom_call.1} parent=1 // pred_region
      _
    $region13: #{tpu_custom_call.1} parent=1 // pred_fallthru
      _
    // Predicated region
    $region14: #{tpu_custom_call.1} parent=1 // pred_check
      _
    $region15: #{tpu_custom_call.1} parent=1 // pred_check_branch
      %25 = sbr.rel (0) target = $region17
    $region16: #{tpu_custom_call.1} parent=1 // pred_region
      %26 = dma.done [#allocation3], 48
    $region17: #{tpu_custom_call.1} parent=1 // pred_fallthru
      _
    %v27 = vld [vmem:[#allocation2] sm:$0x7]
    %v28 = vld [vmem:[%s1] sm:$0x7]
    %v29 = vld [vmem:[%s2] sm:$0x7]
    %v30 = vsub.f32 %v27, %v28
    %v31 = vrcp.pop %v29
    %v32 = vmul.f32 %v30, %v31
    %v33 = vlaneseq
    %vm34 = vcmp.ge.s32.totalorder %v33, 0
    %vm35 = vcmp.lt.s32.totalorder %v33, 384
    %vm36 = vmand %vm34, %vm35
    %37 = vst.msk [vmem:[#allocation5] sm:$0x7] %vm36, %v32
    // Predicated region
    $region18: #{tpu_custom_call.1} parent=1 // pred_check
      _
    $region19: #{tpu_custom_call.1} parent=1 // pred_check_branch
      %39 = sbr.rel (0) target = $region21
    $region20: #{tpu_custom_call.1} parent=1 // pred_region
      %s41 = ssub.s32 48, 48
      %42 = vsyncadd [#allocation4], %s41
      %s44 = sshll.u32 [#allocation5], 4
      %s45 = int_to_ptr.vmem [resolvable:$true] %s44
      %47 = dma.vmem_to_hbm [thread:$0]  %s45, 48, %s3, [#allocation4]
    $region21: #{tpu_custom_call.1} parent=1 // pred_fallthru
      _
    // Predicated region
    $region22: #{tpu_custom_call.1} parent=1 // pred_check
      _
    $region23: #{tpu_custom_call.1} parent=1 // pred_check_branch
      %49 = sbr.rel (0) target = $region25
    $region24: #{tpu_custom_call.1} parent=1 // pred_region
      %50 = dma.done [#allocation4], 48
    $region25: #{tpu_custom_call.1} parent=1 // pred_fallthru
      _
    %51 = vsyncpa [#allocation3], 1
    %52 = vsyncpa [#allocation4], 1

</llo_original>
